<compile_context>
chip_gen: v7x
topology: tpu7x:2x2x1
jax: 0.10.0
libtpu: 0.0.40
codegen_flags: <defaults>
</compile_context>

<pallas_src>
import jax
import jax.numpy as jnp
from jax.experimental import pallas as pl
from jax.experimental.pallas import tpu as pltpu


# ----------------------------------------------------------------------------- kernel
def _fused_kernel(w1_ref, b1_ref, w2_ref, b2_ref, x1_ref, x2_ref, o_ref):
    # x1_ref / x2_ref : (3, TR, L) or (3, 1, TB) VMEM tiles (channel axis leading)
    # w*_ref / b*_ref : tiny SMEM scalar arrays (constants pre-folded)
    # o_ref           : (TR, L) or (1, TB) VMEM tile
    #
    # 1x1 conv (3 -> 1 channel) == per-channel scalar FMA over the leading C axis.
    v1 = (w1_ref[0] * x1_ref[0]
          + w1_ref[1] * x1_ref[1]
          + w1_ref[2] * x1_ref[2]
          + b1_ref[0])                      # == conv_point(x1) + 3   (folded)
    v3 = (w2_ref[0] * x2_ref[0]
          + w2_ref[1] * x2_ref[1]
          + w2_ref[2] * x2_ref[2]
          + b2_ref[0])                      # == conv_x(x2) / 6       (folded)
    # clamp_min/clamp_max of (3 + conv_point) to [0, 6], times conv_x / 6.
    o_ref[...] = jnp.clip(v1, 0.0, 6.0) * v3


# ----------------------------------------------------------------------------- tiling
_CAP_TILE_ELEMS = 256 * 1024   # per-step output-tile cap (f32 elems) -> ~14.7 MiB/step total
_MIN_TILE_ELEMS = 64 * 1024    # don't shrink tiles below ~256 KiB just to widen the grid
_TARGET_STEPS = 8              # enough steps for v7x megacore + pipelining depth


def _plan_tiles(N, HW):
    """Choose (lane, rows, tr) for the copy-free (N, C, rows, lane) layout.

    Returns None when HW is not a multiple of 128 (awkward-HW fallback path).
    Preference order:
      1) >= _TARGET_STEPS grid steps with tiles >= _MIN_TILE_ELEMS (keep both v7x
         TensorCores streaming without becoming per-step-overhead bound),
      2) then >= 2 steps with tiles >= _MIN_TILE_ELEMS,
      3) then simply the largest per-step tile (small-problem regime).
    Every candidate respects the VMEM cap, so tr can never blow scoped VMEM.
    """
    if HW % 128 != 0:
        return None
    best_key, best = None, None
    for lane in (1024, 512, 256, 128):
        if HW % lane != 0:
            continue
        rows = HW // lane
        # Legal row-block sizes: the full `rows` extent, or any multiple of 8 <= rows.
        trs = {rows}
        if rows >= 8:
            t = max(8, min(rows, _CAP_TILE_ELEMS // lane) // 8 * 8)
            while True:
                trs.add(t)
                if t == 8:
                    break
                t = max(8, (t // 2) // 8 * 8)
        for tr in trs:
            if tr > rows or (tr != rows and tr % 8 != 0):
                continue
            tile = tr * lane
            if tile > _CAP_TILE_ELEMS:          # never exceed the VMEM budget
                continue
            steps = N * (-(-rows // tr))
            big_enough = tile >= _MIN_TILE_ELEMS
            key = (big_enough and steps >= _TARGET_STEPS,
                   big_enough and steps >= 2,
                   tile,
                   lane)
            if best_key is None or key > best_key:
                best_key, best = key, (lane, rows, tr)
    return best


# ----------------------------------------------------------------------------- wrapper
def fused_conv_hardswish_mul(x1, x2, w1, b1, w2, b2):
    """x1, x2: (N, 3, H, W) float32. w1, w2: (1, 3, 1, 1). b1, b2: (1,)."""
    N, C, H, W = x1.shape
    assert C == 3 and x2.shape == x1.shape
    HW = H * W

    # Fold constants: (3 + conv1) and (conv2 / 6) become pure affine params.
    w1f = w1.reshape(C).astype(jnp.float32)
    b1f = (b1.reshape(1) + 3.0).astype(jnp.float32)
    w2f = (w2.reshape(C) / 6.0).astype(jnp.float32)
    b2f = (b2.reshape(1) / 6.0).astype(jnp.float32)

    smem_spec = pl.BlockSpec(memory_space=pltpu.MemorySpace.SMEM)

    plan = _plan_tiles(N, HW)
    if plan is not None:
        # Dense path: copy-free reshape to (N, C, rows, lane); C leads the block so
        # the (rows, lane) slab is fully sublane/lane dense.
        lane, rows, tr = plan
        row_blocks = -(-rows // tr)
        x1r = x1.reshape(N, C, rows, lane)          # copy-free (NCHW contiguity)
        x2r = x2.reshape(N, C, rows, lane)
        x_spec = pl.BlockSpec((pl.Squeezed(), C, tr, lane),
                              lambda n, i: (n, 0, i, 0))
        o_spec = pl.BlockSpec((pl.Squeezed(), tr, lane),
                              lambda n, i: (n, i, 0))
        out_shape = jax.ShapeDtypeStruct((N, rows, lane), jnp.float32)
        grid = (N, row_blocks)
    else:
        # Awkward HW (not a multiple of 128): tile the flat spatial axis directly.
        # The last block is partial (reads of the out-of-bounds remainder are ignored
        # because the write-back is masked), so no host-side pad/slice copies at all.
        tb = HW if HW < 128 else min((HW // 128) * 128, 128 * 1024)
        hw_blocks = -(-HW // tb)
        x1r = x1.reshape(N, C, 1, HW)               # copy-free
        x2r = x2.reshape(N, C, 1, HW)
        x_spec = pl.BlockSpec((pl.Squeezed(), C, 1, tb),
                              lambda n, i: (n, 0, 0, i))
        o_spec = pl.BlockSpec((pl.Squeezed(), 1, tb),
                              lambda n, i: (n, 0, i))
        out_shape = jax.ShapeDtypeStruct((N, 1, HW), jnp.float32)
        grid = (N, hw_blocks)

    out = pl.pallas_call(
        _fused_kernel,
        out_shape=out_shape,
        grid=grid,
        in_specs=[smem_spec, smem_spec, smem_spec, smem_spec, x_spec, x_spec],
        out_specs=o_spec,
        compiler_params=pltpu.CompilerParams(
            dimension_semantics=("parallel", "parallel"),
            # Explicit limit: ~14.7 MiB/step double-buffered at the 256K-elem cap;
            # 32 MiB is safe on v5e/v6e/v7x and covers v5e's smaller scoped default.
            vmem_limit_bytes=32 * 1024 * 1024),
        cost_estimate=pl.CostEstimate(
            flops=15 * N * HW,
            bytes_accessed=28 * N * HW,
            transcendentals=0),
    )(w1f, b1f, w2f, b2f, x1r, x2r)

    # Reshape of the lane-dense output slab back to NCHW is free.
    return out.reshape(N, 1, H, W)


# ----------------------------------------------------------------------------- reference
def _reference(x1, x2, w1, b1, w2, b2):
    # Pure-JAX reference of the PyTorch forward (unfolded math).
    v1 = jnp.einsum("nchw,c->nhw", x1, w1.reshape(3)) + b1.reshape(())
    v3 = jnp.einsum("nchw,c->nhw", x2, w2.reshape(3)) + b2.reshape(())
    v6 = jnp.clip(3.0 + v1, 0.0, 6.0)
    return ((v3 * v6) / 6.0)[:, None, :, :]


if __name__ == "__main__":
    key = jax.random.PRNGKey(0)
    k1, k2, k3, k4, k5, k6 = jax.random.split(key, 6)

    N, C, H, W = 2, 3, 64, 64
    x1 = jax.random.normal(k1, (N, C, H, W), dtype=jnp.float32)
    x2 = jax.random.normal(k2, (N, C, H, W), dtype=jnp.float32)

    # Deterministic parameter init (Conv2d(3, 1, 1) shapes).
    w1 = jax.random.normal(k3, (1, 3, 1, 1), dtype=jnp.float32) * 0.5
    b1 = jax.random.normal(k4, (1,), dtype=jnp.float32) * 0.1
    w2 = jax.random.normal(k5, (1, 3, 1, 1), dtype=jnp.float32) * 0.5
    b2 = jax.random.normal(k6, (1,), dtype=jnp.float32) * 0.1

    out = fused_conv_hardswish_mul(x1, x2, w1, b1, w2, b2)
    out = jax.block_until_ready(out)

    ref = _reference(x1, x2, w1, b1, w2, b2)
    assert out.shape == (N, 1, H, W), out.shape
    assert jnp.allclose(out, ref, atol=1e-5, rtol=1e-5), "mismatch vs reference"

    print("KERNEL_OK")
</pallas_src>

<mosaic_0001>
module attributes {stable_mosaic.version = 11 : i64} {
  func.func @_fused_kernel(%arg0: i32, %arg1: i32, %arg2: memref<3xf32, #tpu.memory_space<smem>>, %arg3: memref<1xf32, #tpu.memory_space<smem>>, %arg4: memref<3xf32, #tpu.memory_space<smem>>, %arg5: memref<1xf32, #tpu.memory_space<smem>>, %arg6: memref<1x3x4x1024xf32, #tpu.memory_space<vmem>>, %arg7: memref<1x3x4x1024xf32, #tpu.memory_space<vmem>>, %arg8: memref<1x4x1024xf32, #tpu.memory_space<vmem>>) attributes {dimension_semantics = [#tpu.dimension_semantics<parallel>, #tpu.dimension_semantics<parallel>], iteration_bounds = array<i64: 2, 1>, scalar_prefetch = 0 : i64, scratch_operands = 0 : i64, tpu.core_type = #tpu.core_type<tc>, window_params = [{transform_indices = @transform_0, window_bounds = array<i64: 3>}, {transform_indices = @transform_1, window_bounds = array<i64: 1>}, {transform_indices = @transform_2, window_bounds = array<i64: 3>}, {transform_indices = @transform_3, window_bounds = array<i64: 1>}, {transform_indices = @transform_4, window_bounds = array<i64: 1, 3, 4, 1024>}, {transform_indices = @transform_5, window_bounds = array<i64: 1, 3, 4, 1024>}, {transform_indices = @transform_6, window_bounds = array<i64: 1, 4, 1024>}]} {
    %c0 = arith.constant 0 : index
    %0 = memref.load %arg2[%c0] : memref<3xf32, #tpu.memory_space<smem>>
    %c0_0 = arith.constant 0 : index
    %c0_1 = arith.constant 0 : index
    %c0_2 = arith.constant 0 : index
    %c0_3 = arith.constant 0 : index
    %1 = vector.load %arg6[%c0_0, %c0_1, %c0_2, %c0_3] : memref<1x3x4x1024xf32, #tpu.memory_space<vmem>>, vector<1x1x4x1024xf32>
    %2 = vector.shape_cast %1 : vector<1x1x4x1024xf32> to vector<4x1024xf32>
    %3 = vector.broadcast %0 : f32 to vector<4x1024xf32>
    %4 = arith.mulf %3, %2 : vector<4x1024xf32>
    %c1 = arith.constant 1 : index
    %5 = memref.load %arg2[%c1] : memref<3xf32, #tpu.memory_space<smem>>
    %c0_4 = arith.constant 0 : index
    %c1_5 = arith.constant 1 : index
    %c0_6 = arith.constant 0 : index
    %c0_7 = arith.constant 0 : index
    %6 = vector.load %arg6[%c0_4, %c1_5, %c0_6, %c0_7] : memref<1x3x4x1024xf32, #tpu.memory_space<vmem>>, vector<1x1x4x1024xf32>
    %7 = vector.shape_cast %6 : vector<1x1x4x1024xf32> to vector<4x1024xf32>
    %8 = vector.broadcast %5 : f32 to vector<4x1024xf32>
    %9 = arith.mulf %8, %7 : vector<4x1024xf32>
    %10 = arith.addf %4, %9 : vector<4x1024xf32>
    %c2 = arith.constant 2 : index
    %11 = memref.load %arg2[%c2] : memref<3xf32, #tpu.memory_space<smem>>
    %c0_8 = arith.constant 0 : index
    %c2_9 = arith.constant 2 : index
    %c0_10 = arith.constant 0 : index
    %c0_11 = arith.constant 0 : index
    %12 = vector.load %arg6[%c0_8, %c2_9, %c0_10, %c0_11] : memref<1x3x4x1024xf32, #tpu.memory_space<vmem>>, vector<1x1x4x1024xf32>
    %13 = vector.shape_cast %12 : vector<1x1x4x1024xf32> to vector<4x1024xf32>
    %14 = vector.broadcast %11 : f32 to vector<4x1024xf32>
    %15 = arith.mulf %14, %13 : vector<4x1024xf32>
    %16 = arith.addf %10, %15 : vector<4x1024xf32>
    %c0_12 = arith.constant 0 : index
    %17 = memref.load %arg3[%c0_12] : memref<1xf32, #tpu.memory_space<smem>>
    %18 = vector.broadcast %17 : f32 to vector<4x1024xf32>
    %19 = arith.addf %16, %18 : vector<4x1024xf32>
    %c0_13 = arith.constant 0 : index
    %20 = memref.load %arg4[%c0_13] : memref<3xf32, #tpu.memory_space<smem>>
    %c0_14 = arith.constant 0 : index
    %c0_15 = arith.constant 0 : index
    %c0_16 = arith.constant 0 : index
    %c0_17 = arith.constant 0 : index
    %21 = vector.load %arg7[%c0_14, %c0_15, %c0_16, %c0_17] : memref<1x3x4x1024xf32, #tpu.memory_space<vmem>>, vector<1x1x4x1024xf32>
    %22 = vector.shape_cast %21 : vector<1x1x4x1024xf32> to vector<4x1024xf32>
    %23 = vector.broadcast %20 : f32 to vector<4x1024xf32>
    %24 = arith.mulf %23, %22 : vector<4x1024xf32>
    %c1_18 = arith.constant 1 : index
    %25 = memref.load %arg4[%c1_18] : memref<3xf32, #tpu.memory_space<smem>>
    %c0_19 = arith.constant 0 : index
    %c1_20 = arith.constant 1 : index
    %c0_21 = arith.constant 0 : index
    %c0_22 = arith.constant 0 : index
    %26 = vector.load %arg7[%c0_19, %c1_20, %c0_21, %c0_22] : memref<1x3x4x1024xf32, #tpu.memory_space<vmem>>, vector<1x1x4x1024xf32>
    %27 = vector.shape_cast %26 : vector<1x1x4x1024xf32> to vector<4x1024xf32>
    %28 = vector.broadcast %25 : f32 to vector<4x1024xf32>
    %29 = arith.mulf %28, %27 : vector<4x1024xf32>
    %30 = arith.addf %24, %29 : vector<4x1024xf32>
    %c2_23 = arith.constant 2 : index
    %31 = memref.load %arg4[%c2_23] : memref<3xf32, #tpu.memory_space<smem>>
    %c0_24 = arith.constant 0 : index
    %c2_25 = arith.constant 2 : index
    %c0_26 = arith.constant 0 : index
    %c0_27 = arith.constant 0 : index
    %32 = vector.load %arg7[%c0_24, %c2_25, %c0_26, %c0_27] : memref<1x3x4x1024xf32, #tpu.memory_space<vmem>>, vector<1x1x4x1024xf32>
    %33 = vector.shape_cast %32 : vector<1x1x4x1024xf32> to vector<4x1024xf32>
    %34 = vector.broadcast %31 : f32 to vector<4x1024xf32>
    %35 = arith.mulf %34, %33 : vector<4x1024xf32>
    %36 = arith.addf %30, %35 : vector<4x1024xf32>
    %c0_28 = arith.constant 0 : index
    %37 = memref.load %arg5[%c0_28] : memref<1xf32, #tpu.memory_space<smem>>
    %38 = vector.broadcast %37 : f32 to vector<4x1024xf32>
    %39 = arith.addf %36, %38 : vector<4x1024xf32>
    %cst = arith.constant 0.000000e+00 : f32
    %cst_29 = arith.constant 6.000000e+00 : f32
    %40 = vector.broadcast %cst : f32 to vector<4x1024xf32>
    %41 = arith.maximumf %40, %19 : vector<4x1024xf32>
    %42 = vector.broadcast %cst_29 : f32 to vector<4x1024xf32>
    %43 = arith.minimumf %42, %41 : vector<4x1024xf32>
    %44 = arith.mulf %43, %39 : vector<4x1024xf32>
    %c0_30 = arith.constant 0 : index
    %c0_31 = arith.constant 0 : index
    %c0_32 = arith.constant 0 : index
    %45 = vector.load %arg8[%c0_30, %c0_31, %c0_32] : memref<1x4x1024xf32, #tpu.memory_space<vmem>>, vector<1x4x1024xf32>
    %46 = vector.shape_cast %45 : vector<1x4x1024xf32> to vector<4x1024xf32>
    %47 = vector.shape_cast %44 : vector<4x1024xf32> to vector<1x4x1024xf32>
    tpu.vector_store %arg8[%c0_30, %c0_31, %c0_32], %47 {strides = array<i32>} : memref<1x4x1024xf32, #tpu.memory_space<vmem>>, vector<1x4x1024xf32>,
    return
  }
  func.func @transform_0(%arg0: i32, %arg1: i32) -> i32 {
    %c0_i32 = arith.constant 0 : i32
    %c0_i32_0 = arith.constant 0 : i32
    return %c0_i32 : i32
  }
  func.func @transform_1(%arg0: i32, %arg1: i32) -> i32 {
    %c0_i32 = arith.constant 0 : i32
    %c0_i32_0 = arith.constant 0 : i32
    return %c0_i32 : i32
  }
  func.func @transform_2(%arg0: i32, %arg1: i32) -> i32 {
    %c0_i32 = arith.constant 0 : i32
    %c0_i32_0 = arith.constant 0 : i32
    return %c0_i32 : i32
  }
  func.func @transform_3(%arg0: i32, %arg1: i32) -> i32 {
    %c0_i32 = arith.constant 0 : i32
    %c0_i32_0 = arith.constant 0 : i32
    return %c0_i32 : i32
  }
  func.func @transform_4(%arg0: i32, %arg1: i32) -> (i32, i32, i32, i32) {
    %c0_i32 = arith.constant 0 : i32
    %c0_i32_0 = arith.constant 0 : i32
    %c0_i32_1 = arith.constant 0 : i32
    return %arg0, %c0_i32, %arg1, %c0_i32_0 : i32, i32, i32, i32
  }
  func.func @transform_5(%arg0: i32, %arg1: i32) -> (i32, i32, i32, i32) {
    %c0_i32 = arith.constant 0 : i32
    %c0_i32_0 = arith.constant 0 : i32
    %c0_i32_1 = arith.constant 0 : i32
    return %arg0, %c0_i32, %arg1, %c0_i32_0 : i32, i32, i32, i32
  }
  func.func @transform_6(%arg0: i32, %arg1: i32) -> (i32, i32, i32) {
    %c0_i32 = arith.constant 0 : i32
    %c0_i32_0 = arith.constant 0 : i32
    return %arg0, %arg1, %c0_i32 : i32, i32, i32
  }
}

</mosaic_0001>

<llo_original>
// kernel: tpu_custom_call.1
$region0: #{tpu_custom_call.1}
  #allocation0 [shape = 'u32[]', space=smem, size = 0x4, offset = 0x4, fixed_abs, tag = 'smem constant byte address 0x4 - core index']
  #allocation1 [shape = 'u32[144,128]{1,0:T(1,128)}', space=vmem, size = 0x12000, scoped, tag = 'internal scratch']
  #allocation2 [shape = 'f32[1]{0:T(128)S(6)}', space=smem, size = 0x200, scoped, tag = 'scoped memory for tpu_custom_call.1']
  #allocation3 [shape = 'f32[1]{0:T(128)S(6)}', space=smem, size = 0x200, scoped, tag = 'scoped memory for tpu_custom_call.1']
  %s0 = inlined_call_operand.vmem [shape: f32[3], index: 0, kind: input, shape index: {}]
  %s1 = inlined_call_operand.<no memory space> [shape: f32[1], index: 1, kind: input, shape index: {}]
  %s2 = inlined_call_operand.vmem [shape: f32[3], index: 2, kind: input, shape index: {}]
  %s3 = inlined_call_operand.<no memory space> [shape: f32[1], index: 3, kind: input, shape index: {}]
  %s4 = inlined_call_operand.hbm [shape: f32[2,3,4,1024], index: 4, kind: input, shape index: {}]
  %s5 = inlined_call_operand.hbm [shape: f32[2,3,4,1024], index: 5, kind: input, shape index: {}]
  %s6 = inlined_call_operand.hbm [shape: f32[2,4,1024], index: 6, kind: output, shape index: {}]
  %s7 = sld [smem:[#allocation0]]
  $region73: #{tpu_custom_call.1} parent=0
    _
  %s9 = ssub.s32 1, %s7
  %s10 = scalar_select 0, %s9, %s7
  %11 = sst [smem:[#allocation2]] %s1
  %12 = sst [smem:[#allocation3]] %s3
  $region1: #{tpu_custom_call.1} parent=0
    #allocation4 [shape = 'u8[512]{0}', space=smem, size = 0x200, scoped, tag = 'input window, operand 0, single buffered']
    #allocation5 [shape = 's32[2]{0}', space=sflag, size = 0x8, scoped, tag = 'scoped memory for tpu_custom_call.1']
    #allocation6 [shape = 's32[2]{0}', space=sflag, size = 0x8, scoped, tag = 'scoped memory for tpu_custom_call.1']
    #allocation7 [shape = 's32[2]{0}', space=sflag, size = 0x8, scoped, tag = 'scoped memory for tpu_custom_call.1']
    #allocation8 [shape = 'u8[512]{0}', space=smem, size = 0x200, scoped, tag = 'input window, operand 2, single buffered']
    #allocation9 [shape = 's32[1]{0}', space=sflag, size = 0x4, scoped, tag = 'scoped memory for tpu_custom_call.1']
    #allocation10 [shape = 'u8[98304]{0}', space=vmem, size = 0x18000, scoped, tag = 'input window, operand 4']
    #allocation11 [shape = 'u8[98304]{0}', space=vmem, size = 0x18000, scoped, tag = 'input window, operand 5']
    #allocation12 [shape = 's32[2]{0}', space=sflag, size = 0x8, scoped, tag = 'scoped memory for tpu_custom_call.1']
    #allocation13 [shape = 'u8[32768]{0}', space=vmem, size = 0x8000, scoped, tag = 'output window, operand 0']
    %13 = vsyncpa [#allocation7], 0
    %14 = vsyncpa [#allocation9], 0
    %15 = vsyncpa [#allocation5], 0
    %s16 = scalar_lea.sflag [#allocation5], 1
    %17 = vsyncpa %s16, 0
    %18 = vsyncpa [#allocation12], 0
    %s19 = scalar_lea.sflag [#allocation12], 1
    %20 = vsyncpa %s19, 0
    %21 = vsyncpa [#allocation6], 0
    %s22 = scalar_lea.sflag [#allocation6], 1
    %23 = vsyncpa %s22, 0
    loop: start=0, step=1, limit=4
    $region2: #{tpu_custom_call.1} parent=1 // loop_pre_header
      _
    $region3: #{tpu_custom_call.1} parent=1 // loop_header
      %s25 = sphi 0, %s29
      %p26 = scmp.ge.s32.totalorder %s25, 4
      %s32 = sphi 0, %s44
      %s33 = sphi 0, %s40
      %s34 = sphi 0, %s32
      %s35 = sphi 0, %s33
      %s36 = sphi 0, %s34
      %s37 = sphi 0, %s35
      %s45 = sphi 0, %s45
      %s47 = sphi 0, %s45
      %s48 = sphi 0, %s47
      %s62 = sphi 0, %s48
      %s66 = sphi 0, %s66
      %s68 = sphi 0, %s66
      %s69 = sphi 0, %s68
      %s83 = sphi 0, %s69
      %s87 = sphi 0, %s87
      %s89 = sphi 0, %s87
      %s90 = sphi 0, %s89
      %s104 = sphi 0, %s90
      %s108 = sphi 0, %s108
      %s110 = sphi 0, %s108
      %s111 = sphi 0, %s110
      %s125 = sphi 0, %s111
      %s133 = sphi 0, %s135
      %s136 = sphi 0, %s133
      %s137 = sphi 0, %s136
      %s153 = sphi 0, %s137
      %s161 = sphi 0, %s163
      %s164 = sphi 0, %s161
      %s165 = sphi 0, %s164
      %s181 = sphi 0, %s165
      %s189 = sphi 0, %s191
      %s192 = sphi 0, %s189
      %s193 = sphi 0, %s192
      %s209 = sphi 0, %s193
    $region4: #{tpu_custom_call.1} parent=1 // loop_header_branch
      %28 = sbr.rel (%p26) target = $region8
    $region5: #{tpu_custom_call.1} parent=1 // loop_body
      %s30 = ssub.s32 %s25, 1
      %s31 = ssub.s32 %s25, 2
      %s38 = sadd.s32 1, %s33
      %p39 = scmp.ge.s32.totalorder %s38, 1
      %s40 = scalar_select %p39, 0, %s38
      %s41 = sadd.s32 1, %s32
      %s42 = scalar_select %p39, %s41, %s32
      %p43 = scmp.ge.s32.totalorder %s42, 2
      %s44 = scalar_select %p43, 0, %s42
      %s46 = sadd.s32 %s45, 1
      %p49 = scmp.eq.s32.totalorder %s25, 1
      %p50 = scmp.ne.s32.totalorder %s45, %s47
      %p51 = scmp.eq.s32.totalorder %s25, 0
      %p52 = por %p50, %p51
      %p53 = scmp.ne.s32.totalorder %s45, %s47
      %p54 = scmp.eq.s32.totalorder %s30, 1
      %p55 = por %p53, %p54
      %p56 = scmp.ne.s32.totalorder %s47, %s48
      %p57 = scmp.eq.s32.totalorder %s30, 0
      %p58 = por %p56, %p57
      %p59 = scmp.ne.s32.totalorder %s47, %s48
      %p60 = scmp.eq.s32.totalorder %s31, 1
      %p61 = por %p59, %p60
      %p63 = scmp.ne.s32.totalorder %s48, %s62
      %p64 = scmp.eq.s32.totalorder %s31, 0
      %p65 = por %p63, %p64
      %s67 = sadd.s32 %s66, 1
      %p70 = scmp.eq.s32.totalorder %s25, 1
      %p71 = scmp.ne.s32.totalorder %s66, %s68
      %p72 = scmp.eq.s32.totalorder %s25, 0
      %p73 = por %p71, %p72
      %p74 = scmp.ne.s32.totalorder %s66, %s68
      %p75 = scmp.eq.s32.totalorder %s30, 1
      %p76 = por %p74, %p75
      %p77 = scmp.ne.s32.totalorder %s68, %s69
      %p78 = scmp.eq.s32.totalorder %s30, 0
      %p79 = por %p77, %p78
      %p80 = scmp.ne.s32.totalorder %s68, %s69
      %p81 = scmp.eq.s32.totalorder %s31, 1
      %p82 = por %p80, %p81
      %p84 = scmp.ne.s32.totalorder %s69, %s83
      %p85 = scmp.eq.s32.totalorder %s31, 0
      %p86 = por %p84, %p85
      %s88 = sadd.s32 %s87, 1
      %p91 = scmp.eq.s32.totalorder %s25, 1
      %p92 = scmp.ne.s32.totalorder %s87, %s89
      %p93 = scmp.eq.s32.totalorder %s25, 0
      %p94 = por %p92, %p93
      %p95 = scmp.ne.s32.totalorder %s87, %s89
      %p96 = scmp.eq.s32.totalorder %s30, 1
      %p97 = por %p95, %p96
      %p98 = scmp.ne.s32.totalorder %s89, %s90
      %p99 = scmp.eq.s32.totalorder %s30, 0
      %p100 = por %p98, %p99
      %p101 = scmp.ne.s32.totalorder %s89, %s90
      %p102 = scmp.eq.s32.totalorder %s31, 1
      %p103 = por %p101, %p102
      %p105 = scmp.ne.s32.totalorder %s90, %s104
      %p106 = scmp.eq.s32.totalorder %s31, 0
      %p107 = por %p105, %p106
      %s109 = sadd.s32 %s108, 1
      %p112 = scmp.eq.s32.totalorder %s25, 1
      %p113 = scmp.ne.s32.totalorder %s108, %s110
      %p114 = scmp.eq.s32.totalorder %s25, 0
      %p115 = por %p113, %p114
      %p116 = scmp.ne.s32.totalorder %s108, %s110
      %p117 = scmp.eq.s32.totalorder %s30, 1
      %p118 = por %p116, %p117
      %p119 = scmp.ne.s32.totalorder %s110, %s111
      %p120 = scmp.eq.s32.totalorder %s30, 0
      %p121 = por %p119, %p120
      %p122 = scmp.ne.s32.totalorder %s110, %s111
      %p123 = scmp.eq.s32.totalorder %s31, 1
      %p124 = por %p122, %p123
      %p126 = scmp.ne.s32.totalorder %s111, %s125
      %p127 = scmp.eq.s32.totalorder %s31, 0
      %p128 = por %p126, %p127
      %s129 = ssub.s32 %s32, %s44
      %s130 = ssub.s32 %s33, %s40
      %s131 = sor.u32 %s129, %s130
      %p132 = scmp.eq.s32.totalorder %s131, 0
      %s134 = sadd.s32 %s133, 1
      %s135 = scalar_select %p132, %s133, %s134
      %p138 = pneg %p132
      %p139 = scmp.eq.s32.totalorder %s25, 1
      %p140 = por %p138, %p139
      %p141 = scmp.ne.s32.totalorder %s133, %s136
      %p142 = scmp.eq.s32.totalorder %s25, 0
      %p143 = por %p141, %p142
      %p144 = scmp.ne.s32.totalorder %s133, %s136
      %p145 = scmp.eq.s32.totalorder %s30, 1
      %p146 = por %p144, %p145
      %p147 = scmp.ne.s32.totalorder %s136, %s137
      %p148 = scmp.eq.s32.totalorder %s30, 0
      %p149 = por %p147, %p148
      %p150 = scmp.ne.s32.totalorder %s136, %s137
      %p151 = scmp.eq.s32.totalorder %s31, 1
      %p152 = por %p150, %p151
      %p154 = scmp.ne.s32.totalorder %s137, %s153
      %p155 = scmp.eq.s32.totalorder %s31, 0
      %p156 = por %p154, %p155
      %s157 = ssub.s32 %s32, %s44
      %s158 = ssub.s32 %s33, %s40
      %s159 = sor.u32 %s157, %s158
      %p160 = scmp.eq.s32.totalorder %s159, 0
      %s162 = sadd.s32 %s161, 1
      %s163 = scalar_select %p160, %s161, %s162
      %p166 = pneg %p160
      %p167 = scmp.eq.s32.totalorder %s25, 1
      %p168 = por %p166, %p167
      %p169 = scmp.ne.s32.totalorder %s161, %s164
      %p170 = scmp.eq.s32.totalorder %s25, 0
      %p171 = por %p169, %p170
      %p172 = scmp.ne.s32.totalorder %s161, %s164
      %p173 = scmp.eq.s32.totalorder %s30, 1
      %p174 = por %p172, %p173
      %p175 = scmp.ne.s32.totalorder %s164, %s165
      %p176 = scmp.eq.s32.totalorder %s30, 0
      %p177 = por %p175, %p176
      %p178 = scmp.ne.s32.totalorder %s164, %s165
      %p179 = scmp.eq.s32.totalorder %s31, 1
      %p180 = por %p178, %p179
      %p182 = scmp.ne.s32.totalorder %s165, %s181
      %p183 = scmp.eq.s32.totalorder %s31, 0
      %p184 = por %p182, %p183
      %s185 = ssub.s32 %s32, %s44
      %s186 = ssub.s32 %s33, %s40
      %s187 = sor.u32 %s185, %s186
      %p188 = scmp.eq.s32.totalorder %s187, 0
      %s190 = sadd.s32 %s189, 1
      %s191 = scalar_select %p188, %s189, %s190
      %p194 = pneg %p188
      %p195 = scmp.eq.s32.totalorder %s25, 1
      %p196 = por %p194, %p195
      %p197 = scmp.ne.s32.totalorder %s189, %s192
      %p198 = scmp.eq.s32.totalorder %s25, 0
      %p199 = por %p197, %p198
      %p200 = scmp.ne.s32.totalorder %s189, %s192
      %p201 = scmp.eq.s32.totalorder %s30, 1
      %p202 = por %p200, %p201
      %p203 = scmp.ne.s32.totalorder %s192, %s193
      %p204 = scmp.eq.s32.totalorder %s30, 0
      %p205 = por %p203, %p204
      %p206 = scmp.ne.s32.totalorder %s192, %s193
      %p207 = scmp.eq.s32.totalorder %s31, 1
      %p208 = por %p206, %p207
      %p210 = scmp.ne.s32.totalorder %s193, %s209
      %p211 = scmp.eq.s32.totalorder %s31, 0
      %p212 = por %p210, %p211
      %p213 = scmp.le.s32.totalorder 1, %s25
      %p214 = scmp.lt.s32.totalorder %s25, 3
      %p215 = pnand %p213, %p214
      %p216 = pneg %p215
      // Predicated region
      $region9: #{tpu_custom_call.1} parent=5 // pred_check
        _
      $region10: #{tpu_custom_call.1} parent=5 // pred_check_branch
        %218 = sbr.rel (%p215) target = $region12
      $region11: #{tpu_custom_call.1} parent=5 // pred_region
        %s219 = ssub.s32 %s25, 1
        // Predicated region
        $region13: #{tpu_custom_call.1} parent=11 // pred_check
          %p220 = pneg %p58
        $region14: #{tpu_custom_call.1} parent=11 // pred_check_branch
          %222 = sbr.rel (%p220) target = $region16
        $region15: #{tpu_custom_call.1} parent=11 // pred_region
          %s224 = ssub.s32 16, 16
          %225 = vsyncadd [#allocation7], %s224
          %s227 = sshll.u32 %s0, 4
          %s228 = int_to_ptr.vmem [resolvable:$true] %s227
          %230 = dma.vmem_to_smem %s228, 16, [#allocation4], [#allocation7]
        $region16: #{tpu_custom_call.1} parent=11 // pred_fallthru
          _
        // Predicated region
        $region17: #{tpu_custom_call.1} parent=11 // pred_check
          %p231 = pneg %p79
        $region18: #{tpu_custom_call.1} parent=11 // pred_check_branch
          %233 = sbr.rel (%p231) target = $region20
        $region19: #{tpu_custom_call.1} parent=11 // pred_region
          _
        $region20: #{tpu_custom_call.1} parent=11 // pred_fallthru
          _
        // Predicated region
        $region21: #{tpu_custom_call.1} parent=11 // pred_check
          %p234 = pneg %p100
        $region22: #{tpu_custom_call.1} parent=11 // pred_check_branch
          %236 = sbr.rel (%p234) target = $region24
        $region23: #{tpu_custom_call.1} parent=11 // pred_region
          %s238 = ssub.s32 16, 16
          %239 = vsyncadd [#allocation9], %s238
          %s241 = sshll.u32 %s2, 4
          %s242 = int_to_ptr.vmem [resolvable:$true] %s241
          %244 = dma.vmem_to_smem %s242, 16, [#allocation8], [#allocation9]
        $region24: #{tpu_custom_call.1} parent=11 // pred_fallthru
          _
        // Predicated region
        $region25: #{tpu_custom_call.1} parent=11 // pred_check
          %p245 = pneg %p121
        $region26: #{tpu_custom_call.1} parent=11 // pred_check_branch
          %247 = sbr.rel (%p245) target = $region28
        $region27: #{tpu_custom_call.1} parent=11 // pred_region
          _
        $region28: #{tpu_custom_call.1} parent=11 // pred_fallthru
          _
      $region12: #{tpu_custom_call.1} parent=5 // pred_fallthru
        _
      %p248 = scmp.lt.s32.totalorder %s25, 2
      // Predicated region
      $region29: #{tpu_custom_call.1} parent=5 // pred_check
        %p249 = pneg %p248
      $region30: #{tpu_custom_call.1} parent=5 // pred_check_branch
        %251 = sbr.rel (%p249) target = $region32
      $region31: #{tpu_custom_call.1} parent=5 // pred_region
        // Predicated region
        $region33: #{tpu_custom_call.1} parent=31 // pred_check
          %p252 = pneg %p143
        $region34: #{tpu_custom_call.1} parent=31 // pred_check_branch
          %254 = sbr.rel (%p252) target = $region36
        $region35: #{tpu_custom_call.1} parent=31 // pred_region
          %s255 = sand.u32 %s133, 1
          %s256 = scalar_lea.sflag [#allocation5], %s255
          %s257 = sand.u32 %s133, 1
          %s258 = smul.addr %s257, 96
          %s259 = scalar_lea.vmem [#allocation10], %s258
          %s261 = ssub.s32 1536, 1536
          %262 = vsyncadd %s256, %s261
          %s263 = smul.addr %s33, 8
          %s264 = smul.addr %s32, 24
          %s265 = sadd.s32 %s263, %s264
          %s266 = smul.addr %s265, 64
          %s267 = scalar_lea.hbm %s4, %s266
          %s268 = sshll.u32 %s259, 4
          %s269 = int_to_ptr.vmem [resolvable:$true] %s268
          %274 = dma.hbm_to_vmem [thread:$0]  %s267, 1536, %s269, %s256, 512, 512, 32
        $region36: #{tpu_custom_call.1} parent=31 // pred_fallthru
          _
        // Predicated region
        $region37: #{tpu_custom_call.1} parent=31 // pred_check
          %p275 = pneg %p171
        $region38: #{tpu_custom_call.1} parent=31 // pred_check_branch
          %277 = sbr.rel (%p275) target = $region40
        $region39: #{tpu_custom_call.1} parent=31 // pred_region
          %s278 = sand.u32 %s161, 1
          %s279 = scalar_lea.sflag [#allocation12], %s278
          %s280 = sand.u32 %s161, 1
          %s281 = smul.addr %s280, 96
          %s282 = scalar_lea.vmem [#allocation11], %s281
          %s284 = ssub.s32 1536, 1536
          %285 = vsyncadd %s279, %s284
          %s286 = smul.addr %s33, 8
          %s287 = smul.addr %s32, 24
          %s288 = sadd.s32 %s286, %s287
          %s289 = smul.addr %s288, 64
          %s290 = scalar_lea.hbm %s5, %s289
          %s291 = sshll.u32 %s282, 4
          %s292 = int_to_ptr.vmem [resolvable:$true] %s291
          %297 = dma.hbm_to_vmem [thread:$0]  %s290, 1536, %s292, %s279, 512, 512, 32
        $region40: #{tpu_custom_call.1} parent=31 // pred_fallthru
          _
      $region32: #{tpu_custom_call.1} parent=5 // pred_fallthru
        _
      %p298 = scmp.le.s32.totalorder 1, %s25
      %p299 = scmp.lt.s32.totalorder %s25, 3
      %p300 = pnand %p298, %p299
      %p301 = pneg %p300
      // Predicated region
      $region41: #{tpu_custom_call.1} parent=5 // pred_check
        _
      $region42: #{tpu_custom_call.1} parent=5 // pred_check_branch
        %303 = sbr.rel (%p300) target = $region44
      $region43: #{tpu_custom_call.1} parent=5 // pred_region
        %s304 = ssub.s32 %s25, 1
        // Predicated region
        $region45: #{tpu_custom_call.1} parent=43 // pred_check
          %p305 = pneg %p58
        $region46: #{tpu_custom_call.1} parent=43 // pred_check_branch
          %307 = sbr.rel (%p305) target = $region48
        $region47: #{tpu_custom_call.1} parent=43 // pred_region
          %308 = dma.done [#allocation7], 16
        $region48: #{tpu_custom_call.1} parent=43 // pred_fallthru
          _
        // Predicated region
        $region49: #{tpu_custom_call.1} parent=43 // pred_check
          %p309 = pneg %p100
        $region50: #{tpu_custom_call.1} parent=43 // pred_check_branch
          %311 = sbr.rel (%p309) target = $region52
        $region51: #{tpu_custom_call.1} parent=43 // pred_region
          %312 = dma.done [#allocation9], 16
        $region52: #{tpu_custom_call.1} parent=43 // pred_fallthru
          _
        %s313 = sand.u32 %s136, 1
        %s314 = scalar_lea.sflag [#allocation5], %s313
        %s315 = sand.u32 %s136, 1
        %s316 = smul.addr %s315, 96
        %s317 = scalar_lea.vmem [#allocation10], %s316
        // Predicated region
        $region53: #{tpu_custom_call.1} parent=43 // pred_check
          %p318 = pneg %p149
        $region54: #{tpu_custom_call.1} parent=43 // pred_check_branch
          %320 = sbr.rel (%p318) target = $region56
        $region55: #{tpu_custom_call.1} parent=43 // pred_region
          %321 = dma.done %s314, 1536
        $region56: #{tpu_custom_call.1} parent=43 // pred_fallthru
          _
        %s322 = sand.u32 %s164, 1
        %s323 = scalar_lea.sflag [#allocation12], %s322
        %s324 = sand.u32 %s164, 1
        %s325 = smul.addr %s324, 96
        %s326 = scalar_lea.vmem [#allocation11], %s325
        // Predicated region
        $region57: #{tpu_custom_call.1} parent=43 // pred_check
          %p327 = pneg %p177
        $region58: #{tpu_custom_call.1} parent=43 // pred_check_branch
          %329 = sbr.rel (%p327) target = $region60
        $region59: #{tpu_custom_call.1} parent=43 // pred_region
          %330 = dma.done %s323, 1536
        $region60: #{tpu_custom_call.1} parent=43 // pred_fallthru
          _
        %331 = sfence
        %p332 = pneg %p58
        %p333 = pneg %p55
        %p334 = pneg %p79
        %p335 = pneg %p76
        %p336 = pneg %p100
        %p337 = pneg %p97
        %p338 = pneg %p121
        %p339 = pneg %p118
        %s340 = sand.u32 %s136, 1
        %s341 = scalar_lea.sflag [#allocation5], %s340
        %s342 = sand.u32 %s136, 1
        %s343 = smul.addr %s342, 96
        %s344 = scalar_lea.vmem [#allocation10], %s343
        %p345 = pneg %p149
        %p346 = pneg %p146
        %s347 = sand.u32 %s164, 1
        %s348 = scalar_lea.sflag [#allocation12], %s347
        %s349 = sand.u32 %s164, 1
        %s350 = smul.addr %s349, 96
        %s351 = scalar_lea.vmem [#allocation11], %s350
        %p352 = pneg %p177
        %p353 = pneg %p174
        %p354 = pneg %p205
        %p355 = pneg %p202
        %s356 = sand.u32 %s192, 1
        %s357 = scalar_lea.sflag [#allocation6], %s356
        %s358 = sand.u32 %s192, 1
        %s359 = smul.addr %s358, 32
        %s360 = scalar_lea.vmem [#allocation13], %s359
        %s361 = sld [smem:[#allocation4]]
        %v362 = vld [vmem:[%s317] sm:$0xff]
        %v363 = vld [vmem:[%s317 + $0x8] sm:$0xff]
        %v364 = vld [vmem:[%s317 + $0x10] sm:$0xff]
        %v365 = vld [vmem:[%s317 + $0x18] sm:$0xff]
        %v366 = vstv %s361
        %v367 = vmul.f32 %v366, %v362
        %v368 = vmul.f32 %v366, %v363
        %v369 = vmul.f32 %v366, %v364
        %v370 = vmul.f32 %v366, %v365
        %s371 = sld [smem:[#allocation4 + $0x1]]
        %s372 = scalar_lea.vmem %s317, 32 [#allocation10]
        %v373 = vld [vmem:[%s372] sm:$0xff]
        %v374 = vld [vmem:[%s372 + $0x8] sm:$0xff]
        %v375 = vld [vmem:[%s372 + $0x10] sm:$0xff]
        %v376 = vld [vmem:[%s372 + $0x18] sm:$0xff]
        %v377 = vstv %s371
        %v378 = vmul.f32 %v377, %v373
        %v379 = vmul.f32 %v377, %v374
        %v380 = vmul.f32 %v377, %v375
        %v381 = vmul.f32 %v377, %v376
        %v382 = vadd.f32 %v367, %v378
        %v383 = vadd.f32 %v368, %v379
        %v384 = vadd.f32 %v369, %v380
        %v385 = vadd.f32 %v370, %v381
        %s386 = sld [smem:[#allocation4 + $0x2]]
        %s387 = scalar_lea.vmem %s317, 64 [#allocation10]
        %v388 = vld [vmem:[%s387] sm:$0xff]
        %v389 = vld [vmem:[%s387 + $0x8] sm:$0xff]
        %v390 = vld [vmem:[%s387 + $0x10] sm:$0xff]
        %v391 = vld [vmem:[%s387 + $0x18] sm:$0xff]
        %v392 = vstv %s386
        %v393 = vmul.f32 %v392, %v388
        %v394 = vmul.f32 %v392, %v389
        %v395 = vmul.f32 %v392, %v390
        %v396 = vmul.f32 %v392, %v391
        %v397 = vadd.f32 %v382, %v393
        %v398 = vadd.f32 %v383, %v394
        %v399 = vadd.f32 %v384, %v395
        %v400 = vadd.f32 %v385, %v396
        %s401 = sld [smem:[#allocation2]]
        %v402 = vstv %s401
        %v403 = vadd.f32 %v397, %v402
        %v404 = vadd.f32 %v398, %v402
        %v405 = vadd.f32 %v399, %v402
        %v406 = vadd.f32 %v400, %v402
        %s407 = sld [smem:[#allocation8]]
        %v408 = vld [vmem:[%s326] sm:$0xff]
        %v409 = vld [vmem:[%s326 + $0x8] sm:$0xff]
        %v410 = vld [vmem:[%s326 + $0x10] sm:$0xff]
        %v411 = vld [vmem:[%s326 + $0x18] sm:$0xff]
        %v412 = vstv %s407
        %v413 = vmul.f32 %v412, %v408
        %v414 = vmul.f32 %v412, %v409
        %v415 = vmul.f32 %v412, %v410
        %v416 = vmul.f32 %v412, %v411
        %s417 = sld [smem:[#allocation8 + $0x1]]
        %s418 = scalar_lea.vmem %s326, 32 [#allocation11]
        %v419 = vld [vmem:[%s418] sm:$0xff]
        %v420 = vld [vmem:[%s418 + $0x8] sm:$0xff]
        %v421 = vld [vmem:[%s418 + $0x10] sm:$0xff]
        %v422 = vld [vmem:[%s418 + $0x18] sm:$0xff]
        %v423 = vstv %s417
        %v424 = vmul.f32 %v423, %v419
        %v425 = vmul.f32 %v423, %v420
        %v426 = vmul.f32 %v423, %v421
        %v427 = vmul.f32 %v423, %v422
        %v428 = vadd.f32 %v413, %v424
        %v429 = vadd.f32 %v414, %v425
        %v430 = vadd.f32 %v415, %v426
        %v431 = vadd.f32 %v416, %v427
        %s432 = sld [smem:[#allocation8 + $0x2]]
        %s433 = scalar_lea.vmem %s326, 64 [#allocation11]
        %v434 = vld [vmem:[%s433] sm:$0xff]
        %v435 = vld [vmem:[%s433 + $0x8] sm:$0xff]
        %v436 = vld [vmem:[%s433 + $0x10] sm:$0xff]
        %v437 = vld [vmem:[%s433 + $0x18] sm:$0xff]
        %v438 = vstv %s432
        %v439 = vmul.f32 %v438, %v434
        %v440 = vmul.f32 %v438, %v435
        %v441 = vmul.f32 %v438, %v436
        %v442 = vmul.f32 %v438, %v437
        %v443 = vadd.f32 %v428, %v439
        %v444 = vadd.f32 %v429, %v440
        %v445 = vadd.f32 %v430, %v441
        %v446 = vadd.f32 %v431, %v442
        %s447 = sld [smem:[#allocation3]]
        %v448 = vstv %s447
        %v449 = vadd.f32 %v443, %v448
        %v450 = vadd.f32 %v444, %v448
        %v451 = vadd.f32 %v445, %v448
        %v452 = vadd.f32 %v446, %v448
        %v453 = vmax.f32 %v403, 0.0
        %v454 = vmax.f32 %v404, 0.0
        %v455 = vmax.f32 %v405, 0.0
        %v456 = vmax.f32 %v406, 0.0
        %v457 = vmin.f32 %v453, 6.0
        %v458 = vmin.f32 %v454, 6.0
        %v459 = vmin.f32 %v455, 6.0
        %v460 = vmin.f32 %v456, 6.0
        %v461 = vmul.f32 %v457, %v449
        %v462 = vmul.f32 %v458, %v450
        %v463 = vmul.f32 %v459, %v451
        %v464 = vmul.f32 %v460, %v452
        %465 = vst [vmem:[%s360] sm:$0xff] %v461
        %466 = vst [vmem:[%s360 + $0x8] sm:$0xff] %v462
        %467 = vst [vmem:[%s360 + $0x10] sm:$0xff] %v463
        %468 = vst [vmem:[%s360 + $0x18] sm:$0xff] %v464
        %s469 = sand.u32 %s192, 1
        %s470 = scalar_lea.sflag [#allocation6], %s469
        %s471 = sand.u32 %s192, 1
        %s472 = smul.addr %s471, 32
        %s473 = scalar_lea.vmem [#allocation13], %s472
        // Predicated region
        $region61: #{tpu_custom_call.1} parent=43 // pred_check
          %p474 = pneg %p202
        $region62: #{tpu_custom_call.1} parent=43 // pred_check_branch
          %476 = sbr.rel (%p474) target = $region64
        $region63: #{tpu_custom_call.1} parent=43 // pred_region
          %s478 = ssub.s32 512, 512
          %479 = vsyncadd %s470, %s478
          %s480 = smul.addr %s35, 8
          %s481 = smul.addr %s34, 8
          %s482 = sadd.s32 %s480, %s481
          %s483 = smul.addr %s482, 64
          %s484 = scalar_lea.hbm %s6, %s483
          %s486 = sshll.u32 %s473, 4
          %s487 = int_to_ptr.vmem [resolvable:$true] %s486
          %489 = dma.vmem_to_hbm [thread:$0]  %s487, 512, %s484, %s470
        $region64: #{tpu_custom_call.1} parent=43 // pred_fallthru
          _
      $region44: #{tpu_custom_call.1} parent=5 // pred_fallthru
        _
      %p490 = scmp.le.s32.totalorder 2, %s25
      // Predicated region
      $region65: #{tpu_custom_call.1} parent=5 // pred_check
        %p491 = pneg %p490
      $region66: #{tpu_custom_call.1} parent=5 // pred_check_branch
        %493 = sbr.rel (%p491) target = $region68
      $region67: #{tpu_custom_call.1} parent=5 // pred_region
        %s494 = ssub.s32 %s25, 2
        // Predicated region
        $region69: #{tpu_custom_call.1} parent=67 // pred_check
          %p495 = pneg %p208
        $region70: #{tpu_custom_call.1} parent=67 // pred_check_branch
          %497 = sbr.rel (%p495) target = $region72
        $region71: #{tpu_custom_call.1} parent=67 // pred_region
          %s498 = sand.u32 %s193, 1
          %s499 = scalar_lea.sflag [#allocation6], %s498
          %s500 = sand.u32 %s193, 1
          %s501 = smul.addr %s500, 32
          %s502 = scalar_lea.vmem [#allocation13], %s501
          %503 = dma.done %s499, 512
        $region72: #{tpu_custom_call.1} parent=67 // pred_fallthru
          _
      $region68: #{tpu_custom_call.1} parent=5 // pred_fallthru
        _
    $region6: #{tpu_custom_call.1} parent=1 // loop_footer
      %s29 = sadd.s32 1, %s25
    $region7: #{tpu_custom_call.1} parent=1 // loop_footer_branch
      %24 = sbr.rel target = $region3
    $region8: #{tpu_custom_call.1} parent=1 // loop_exit
      _
    %504 = vsyncpa [#allocation5], 1
    %s505 = scalar_lea.sflag [#allocation5], 1
    %506 = vsyncpa %s505, 1
    %507 = vsyncpa [#allocation12], 1
    %s508 = scalar_lea.sflag [#allocation12], 1
    %509 = vsyncpa %s508, 1
    %510 = vsyncpa [#allocation6], 1
    %s511 = scalar_lea.sflag [#allocation6], 1
    %512 = vsyncpa %s511, 1
    %513 = vsyncpa [#allocation7], 1
    %s514 = scalar_lea.sflag [#allocation7], 1
    %515 = vsyncpa %s514, 1
    %516 = vsyncpa [#allocation9], 1

</llo_original>
